<compile_context>
chip_gen: v7x
topology: tpu7x:2x2x1
jax: 0.10.0
libtpu: 0.0.40
codegen_flags: <defaults>
</compile_context>

<pallas_src>
import math

import jax
import jax.numpy as jnp
from jax.experimental import pallas as pl
from jax.experimental.pallas import tpu as pltpu


def _round_up(x: int, m: int) -> int:
    return ((x + m - 1) // m) * m


# ----------------------------------------------------------------------------
# Capability probe: single-buffered resident params (pipeline_mode=Buffered(1))
# ----------------------------------------------------------------------------
_SINGLE_BUFFER_OK = None


def _single_buffer_params_supported() -> bool:
    """True if this Pallas/Mosaic build accepts pipeline_mode=pl.Buffered(1)."""
    global _SINGLE_BUFFER_OK
    if _SINGLE_BUFFER_OK is None:
        try:
            def _probe(x_ref, o_ref):
                o_ref[...] = x_ref[...]

            out = pl.pallas_call(
                _probe,
                out_shape=jax.ShapeDtypeStruct((16, 128), jnp.float32),
                grid=(2,),
                in_specs=[pl.BlockSpec((8, 128), lambda i: (0, 0),
                                       pipeline_mode=pl.Buffered(1))],
                out_specs=pl.BlockSpec((8, 128), lambda i: (i, 0)),
            )(jnp.zeros((8, 128), jnp.float32))
            jax.block_until_ready(out)
            _SINGLE_BUFFER_OK = True
        except Exception:
            _SINGLE_BUFFER_OK = False
    return _SINGLE_BUFFER_OK


def _resident_spec(shape, single_buffered: bool) -> pl.BlockSpec:
    """Constant-index (resident across the grid) parameter block."""
    index_map = lambda i: (0,) * len(shape)
    if single_buffered:
        return pl.BlockSpec(shape, index_map, pipeline_mode=pl.Buffered(1))
    return pl.BlockSpec(shape, index_map)


# ----------------------------------------------------------------------------
# Pallas kernel: fused concat -> (Linear -> ReLU)* -> Linear
# ----------------------------------------------------------------------------
def _make_qcritic_kernel(num_layers: int, obs_dim: int, act_dim: int, obs_pad: int):
    def kernel(*refs):
        phi_ref, act_ref = refs[0], refs[1]
        param_refs = refs[2:2 + 2 * num_layers]
        w_refs = param_refs[0::2]                     # [din_pad, dout_pad] per layer
        b_refs = param_refs[1::2]                     # [1, dout_pad] f32 per layer
        out_ref = refs[2 + 2 * num_layers]            # [tb, out_pad] f32
        x_ref = refs[3 + 2 * num_layers]              # f32 VMEM scratch [tb, obs_pad+act_pad]

        compute_dtype = w_refs[0].dtype

        # Fused torch.cat([phi, action], -1) + zero-pad, assembled in VMEM.
        # phi lands at lane offset 0, action at lane offset obs_pad (a multiple
        # of 128); W0 rows were packed at the same offsets, so padded lanes are
        # zero and contribute nothing.
        x_ref[...] = jnp.zeros_like(x_ref)
        x_ref[:, :obs_dim] = phi_ref[...].astype(jnp.float32)
        x_ref[:, obs_pad:obs_pad + act_dim] = act_ref[...].astype(jnp.float32)

        h = x_ref[...].astype(compute_dtype)
        for l in range(num_layers):
            acc = jnp.dot(h, w_refs[l][...], preferred_element_type=jnp.float32)
            acc = acc + b_refs[l][...]                          # bias already f32
            if l + 1 < num_layers:
                h = jnp.maximum(acc, 0.0).astype(compute_dtype)  # hidden ReLU
            else:
                h = acc                                          # output act: Identity
        out_ref[...] = h.astype(out_ref.dtype)

    return kernel


# ----------------------------------------------------------------------------
# Parameter packing: per-layer, 128-lane padded, zero-preserving
# ----------------------------------------------------------------------------
def pack_qcritic_params(weights, biases, obs_dim, act_dim, dtype=jnp.bfloat16):
    """weights[l]: [D_l, D_{l+1}] (x @ W layout), biases[l]: [D_{l+1}].

    Returns a dict of per-layer padded slabs.  Layer 0 rows are split so that
    phi rows sit at [0, obs_dim) and action rows at [obs_pad, obs_pad+act_dim),
    matching the in-kernel VMEM assembly.  Padded rows/cols/biases are zero, so
    padded lanes stay exactly zero through every layer (ReLU(0) = 0).
    Pack once at init, not per step.
    """
    num_layers = len(weights)
    dims = [weights[0].shape[0]] + [w.shape[1] for w in weights]
    assert dims[0] == obs_dim + act_dim, "layer_dims[0] must be obs_dim + act_dim"

    obs_pad = _round_up(obs_dim, 128)
    act_pad = _round_up(act_dim, 128)

    packed_w, packed_b = [], []
    for l, (w, b) in enumerate(zip(weights, biases)):
        di, do = w.shape
        do_pad = _round_up(do, 128)
        if l == 0:
            wp = jnp.zeros((obs_pad + act_pad, do_pad), dtype)
            wp = wp.at[:obs_dim, :do].set(w[:obs_dim].astype(dtype))
            wp = wp.at[obs_pad:obs_pad + act_dim, :do].set(w[obs_dim:].astype(dtype))
        else:
            di_pad = _round_up(di, 128)
            wp = jnp.zeros((di_pad, do_pad), dtype).at[:di, :do].set(w.astype(dtype))
        bp = jnp.zeros((1, do_pad), jnp.float32).at[0, :do].set(b.astype(jnp.float32))
        packed_w.append(wp)
        packed_b.append(bp)

    return {
        "weights": packed_w,
        "biases": packed_b,
        "layer_dims": tuple(dims),
        "obs_dim": obs_dim,
        "act_dim": act_dim,
        "obs_pad": obs_pad,
    }


def _pad_batch(a, b_pad):
    batch = a.shape[0]
    if batch == b_pad:
        return a
    pad = jnp.zeros((b_pad - batch,) + a.shape[1:], a.dtype)
    return jnp.concatenate([a, pad], axis=0)


# ----------------------------------------------------------------------------
# Wrapper: batch-pad + tiled pallas_call + unpad/squeeze
# ----------------------------------------------------------------------------
def mlp_q_critic_forward(phi, action, params, *, tile_b=256):
    """phi: [B, obs_dim]; action: [B, act_dim]; returns q: [B] (out_dim == 1)."""
    global _SINGLE_BUFFER_OK
    weights, biases = params["weights"], params["biases"]
    obs_dim, act_dim = params["obs_dim"], params["act_dim"]
    obs_pad = params["obs_pad"]
    out_dim = params["layer_dims"][-1]
    num_layers = len(weights)

    batch = phi.shape[0]
    assert phi.shape[-1] == obs_dim and action.shape[-1] == act_dim
    assert action.shape[0] == batch

    # Batch tiling: multiples of 8; keep >= 2 tiles whenever possible so
    # dimension_semantics=("parallel",) can shard over v7x's two TensorCores.
    b_pad = _round_up(batch, 8)
    tb = min(_round_up(tile_b, 8), b_pad)
    if b_pad >= 16:
        tb = min(tb, _round_up((b_pad + 1) // 2, 8))
    b_pad = _round_up(b_pad, tb)
    grid = (b_pad // tb,)

    phi_p = _pad_batch(phi, b_pad)
    act_p = _pad_batch(action, b_pad)

    d_in_cat = weights[0].shape[0]        # obs_pad + act_pad
    d_out_pad = weights[-1].shape[1]      # round_up(out_dim, 128)

    # Cost estimate + explicit VMEM budget.
    param_bytes = (sum(int(w.size) * w.dtype.itemsize for w in weights)
                   + sum(int(b.size) * b.dtype.itemsize for b in biases))
    flops = 2 * b_pad * sum(int(w.shape[0]) * int(w.shape[1]) for w in weights)
    io_bytes = (int(phi_p.size) * phi_p.dtype.itemsize
                + int(act_p.size) * act_p.dtype.itemsize
                + b_pad * d_out_pad * 4 + param_bytes)
    cost = pl.CostEstimate(flops=int(flops), transcendentals=0,
                           bytes_accessed=int(io_bytes))

    max_width = max([d_in_cat] + [int(w.shape[1]) for w in weights])
    vmem_need = (2 * param_bytes                                        # params (<=2 bufs)
                 + 2 * tb * (obs_dim * phi_p.dtype.itemsize
                             + act_dim * act_p.dtype.itemsize)          # input tiles
                 + 2 * tb * d_out_pad * 4                               # output tiles
                 + tb * d_in_cat * 4                                    # x scratch (f32)
                 + 4 * tb * max_width * 4)                              # f32 temporaries
    vmem_limit = int(min(max(2 * vmem_need, 32 * 2 ** 20), 48 * 2 ** 20))
    # TODO(synk): for very large hidden dims (resident params >~20 MiB) add an
    # "arbitrary" layer grid axis with per-layer weight index_maps so weights
    # stream instead of staying resident (v7x has only 64 MiB VMEM).

    single_buffered = _single_buffer_params_supported()

    def batch_spec(width):
        return pl.BlockSpec((tb, width), lambda i: (i, 0))

    def build_call(use_single_buffer):
        in_specs = [batch_spec(obs_dim), batch_spec(act_dim)]
        for w, b in zip(weights, biases):
            in_specs.append(_resident_spec(w.shape, use_single_buffer))
            in_specs.append(_resident_spec(b.shape, use_single_buffer))
        return pl.pallas_call(
            _make_qcritic_kernel(num_layers, obs_dim, act_dim, obs_pad),
            out_shape=jax.ShapeDtypeStruct((b_pad, d_out_pad), jnp.float32),
            grid=grid,
            in_specs=in_specs,
            out_specs=pl.BlockSpec((tb, d_out_pad), lambda i: (i, 0)),
            scratch_shapes=[pltpu.VMEM((tb, d_in_cat), jnp.float32)],
            compiler_params=pltpu.CompilerParams(
                dimension_semantics=("parallel",),
                vmem_limit_bytes=vmem_limit),
            cost_estimate=cost,
        )

    args = [phi_p, act_p]
    for w, b in zip(weights, biases):
        args += [w, b]

    try:
        out_pad = build_call(single_buffered)(*args)
    except Exception:
        if not single_buffered:
            raise
        _SINGLE_BUFFER_OK = False
        out_pad = build_call(False)(*args)

    q = out_pad[:batch, :out_dim]
    if out_dim == 1:
        q = q[:, 0]  # mimic torch .squeeze(-1)
    return q


# ----------------------------------------------------------------------------
# Deterministic parameter init (mirrors layer_init with init_type='orthogonal_')
# ----------------------------------------------------------------------------
def _calculate_gain(nonlinearity: str) -> float:
    nonlinearity = nonlinearity.lower()
    if nonlinearity == "relu":
        return math.sqrt(2.0)
    if nonlinearity == "tanh":
        return 5.0 / 3.0
    return 1.0


def _orthogonal(key, rows: int, cols: int, gain: float) -> jnp.ndarray:
    flat = jax.random.normal(key, (rows, cols), dtype=jnp.float32)
    if rows < cols:
        flat = flat.T
    q, r = jnp.linalg.qr(flat)
    d = jnp.sign(jnp.diagonal(r))
    q = q * d[None, :]
    if rows < cols:
        q = q.T
    return gain * q.astype(jnp.float32)


def init_qcritic_params(key, layer_dims, hidden_act="ReLU",
                        output_act="Linear", w_scale=1.0, last_w_scale=0.001):
    """Returns weights as [D_in, D_out] (pre-transposed from PyTorch [out, in])."""
    weights, biases = [], []
    n = len(layer_dims) - 1
    for i in range(n):
        key, sub = jax.random.split(key)
        is_last = (i + 1 == n)
        act = output_act if is_last else hidden_act
        scale = last_w_scale if is_last else w_scale
        gain = _calculate_gain(act)
        w_pt = _orthogonal(sub, layer_dims[i + 1], layer_dims[i], gain) * scale
        weights.append(jnp.asarray(w_pt.T, dtype=jnp.float32))
        biases.append(jnp.zeros((layer_dims[i + 1],), dtype=jnp.float32))
    return weights, biases


# ----------------------------------------------------------------------------
# Pure-JAX reference for sanity checks
# ----------------------------------------------------------------------------
def reference_forward(phi, action, weights, biases):
    h = jnp.concatenate([phi, action], axis=-1).astype(jnp.float32)
    n = len(weights)
    for l in range(n):
        h = h @ weights[l] + biases[l][None, :]
        if l + 1 < n:
            h = jnp.maximum(h, 0.0)
    if weights[-1].shape[1] == 1:
        h = h[:, 0]
    return h


if __name__ == "__main__":
    # Small shapes consistent with the module: [obs|act] -> hidden -> hidden -> 1
    obs_dim, act_dim, hidden = 24, 8, 32
    layer_dims = (obs_dim + act_dim, hidden, hidden, 1)
    batch = 4

    key = jax.random.PRNGKey(0)
    key, pkey, okey, akey = jax.random.split(key, 4)

    weights, biases = init_qcritic_params(pkey, layer_dims)
    phi = jax.random.normal(okey, (batch, obs_dim), dtype=jnp.float32)
    action = jax.random.normal(akey, (batch, act_dim), dtype=jnp.float32)

    ref = reference_forward(phi, action, weights, biases)

    # f32 path: tight semantic check of the fused kernel.
    params_f32 = pack_qcritic_params(weights, biases, obs_dim, act_dim,
                                     dtype=jnp.float32)
    q_f32 = jax.block_until_ready(mlp_q_critic_forward(phi, action, params_f32))
    assert q_f32.shape == (batch,)
    assert jnp.allclose(q_f32, ref, atol=1e-5, rtol=1e-4), "f32 mismatch vs reference"

    # bf16 path (default): native bf16 MXU, f32 accumulation; looser tolerance.
    params_bf16 = pack_qcritic_params(weights, biases, obs_dim, act_dim)
    q_bf16 = jax.block_until_ready(mlp_q_critic_forward(phi, action, params_bf16))
    assert q_bf16.shape == (batch,)
    assert jnp.allclose(q_bf16, ref, atol=2e-3, rtol=5e-2), "bf16 mismatch vs reference"

    print("KERNEL_OK")
</pallas_src>

<mosaic_0001>
module attributes {stable_mosaic.version = 11 : i64} {
  func.func @_probe(%arg0: i32, %arg1: memref<8x128xf32, #tpu.memory_space<vmem>>, %arg2: memref<8x128xf32, #tpu.memory_space<vmem>>) attributes {dimension_semantics = [#tpu.dimension_semantics<arbitrary>], iteration_bounds = array<i64: 2>, scalar_prefetch = 0 : i64, scratch_operands = 0 : i64, tpu.core_type = #tpu.core_type<tc>, window_params = [{pipeline_mode = #tpu.pipeline_mode<synchronous>, transform_indices = @transform_0, window_bounds = array<i64: 8, 128>}, {transform_indices = @transform_1, window_bounds = array<i64: 8, 128>}]} {
    %c0 = arith.constant 0 : index
    %c0_0 = arith.constant 0 : index
    %0 = vector.load %arg1[%c0, %c0_0] : memref<8x128xf32, #tpu.memory_space<vmem>>, vector<8x128xf32>
    %c0_1 = arith.constant 0 : index
    %c0_2 = arith.constant 0 : index
    %1 = vector.load %arg2[%c0_1, %c0_2] : memref<8x128xf32, #tpu.memory_space<vmem>>, vector<8x128xf32>
    tpu.vector_store %arg2[%c0_1, %c0_2], %0 {strides = array<i32>} : memref<8x128xf32, #tpu.memory_space<vmem>>, vector<8x128xf32>,
    return
  }
  func.func @transform_0(%arg0: i32) -> (i32, i32) {
    %c0_i32 = arith.constant 0 : i32
    %c0_i32_0 = arith.constant 0 : i32
    %c0_i32_1 = arith.constant 0 : i32
    return %c0_i32, %c0_i32_0 : i32, i32
  }
  func.func @transform_1(%arg0: i32) -> (i32, i32) {
    %c0_i32 = arith.constant 0 : i32
    %c0_i32_0 = arith.constant 0 : i32
    return %arg0, %c0_i32 : i32, i32
  }
}

module attributes {stable_mosaic.version = 11 : i64} {
  func.func @kernel(%arg0: i32, %arg1: memref<8x24xf32, #tpu.memory_space<vmem>>, %arg2: memref<8x8xf32, #tpu.memory_space<vmem>>, %arg3: memref<256x128xf32, #tpu.memory_space<vmem>>, %arg4: memref<1x128xf32, #tpu.memory_space<vmem>>, %arg5: memref<128x128xf32, #tpu.memory_space<vmem>>, %arg6: memref<1x128xf32, #tpu.memory_space<vmem>>, %arg7: memref<128x128xf32, #tpu.memory_space<vmem>>, %arg8: memref<1x128xf32, #tpu.memory_space<vmem>>, %arg9: memref<8x128xf32, #tpu.memory_space<vmem>>, %arg10: memref<8x256xf32, #tpu.memory_space<vmem>>) attributes {dimension_semantics = [#tpu.dimension_semantics<parallel>], iteration_bounds = array<i64: 1>, scalar_prefetch = 0 : i64, scratch_operands = 1 : i64, tpu.core_type = #tpu.core_type<tc>, window_params = [{transform_indices = @transform_0, window_bounds = array<i64: 8, 24>}, {transform_indices = @transform_1, window_bounds = array<i64: 8, 8>}, {pipeline_mode = #tpu.pipeline_mode<synchronous>, transform_indices = @transform_2, window_bounds = array<i64: 256, 128>}, {pipeline_mode = #tpu.pipeline_mode<synchronous>, transform_indices = @transform_3, window_bounds = array<i64: 1, 128>}, {pipeline_mode = #tpu.pipeline_mode<synchronous>, transform_indices = @transform_4, window_bounds = array<i64: 128, 128>}, {pipeline_mode = #tpu.pipeline_mode<synchronous>, transform_indices = @transform_5, window_bounds = array<i64: 1, 128>}, {pipeline_mode = #tpu.pipeline_mode<synchronous>, transform_indices = @transform_6, window_bounds = array<i64: 128, 128>}, {pipeline_mode = #tpu.pipeline_mode<synchronous>, transform_indices = @transform_7, window_bounds = array<i64: 1, 128>}, {transform_indices = @transform_8, window_bounds = array<i64: 8, 128>}]} {
    %cst = arith.constant 0.000000e+00 : f32
    %0 = vector.broadcast %cst : f32 to vector<8x256xf32>
    %c0 = arith.constant 0 : index
    %c0_0 = arith.constant 0 : index
    %1 = vector.load %arg10[%c0, %c0_0] : memref<8x256xf32, #tpu.memory_space<vmem>>, vector<8x256xf32>
    tpu.vector_store %arg10[%c0, %c0_0], %0 {strides = array<i32>} : memref<8x256xf32, #tpu.memory_space<vmem>>, vector<8x256xf32>,
    %c0_1 = arith.constant 0 : index
    %c0_2 = arith.constant 0 : index
    %2 = vector.load %arg1[%c0_1, %c0_2] : memref<8x24xf32, #tpu.memory_space<vmem>>, vector<8x24xf32>
    %c0_3 = arith.constant 0 : index
    %c0_4 = arith.constant 0 : index
    %3 = vector.load %arg10[%c0_3, %c0_4] : memref<8x256xf32, #tpu.memory_space<vmem>>, vector<8x24xf32>
    tpu.vector_store %arg10[%c0_3, %c0_4], %2 {strides = array<i32>} : memref<8x256xf32, #tpu.memory_space<vmem>>, vector<8x24xf32>,
    %c0_5 = arith.constant 0 : index
    %c0_6 = arith.constant 0 : index
    %4 = vector.load %arg2[%c0_5, %c0_6] : memref<8x8xf32, #tpu.memory_space<vmem>>, vector<8x8xf32>
    %c0_7 = arith.constant 0 : index
    %c128 = arith.constant 128 : index
    %5 = vector.load %arg10[%c0_7, %c128] : memref<8x256xf32, #tpu.memory_space<vmem>>, vector<8x8xf32>
    tpu.vector_store %arg10[%c0_7, %c128], %4 {strides = array<i32>} : memref<8x256xf32, #tpu.memory_space<vmem>>, vector<8x8xf32>,
    %c0_8 = arith.constant 0 : index
    %c0_9 = arith.constant 0 : index
    %6 = vector.load %arg10[%c0_8, %c0_9] : memref<8x256xf32, #tpu.memory_space<vmem>>, vector<8x256xf32>
    %c0_10 = arith.constant 0 : index
    %c0_11 = arith.constant 0 : index
    %7 = vector.load %arg3[%c0_10, %c0_11] : memref<256x128xf32, #tpu.memory_space<vmem>>, vector<256x128xf32>
    %cst_12 = arith.constant dense<0.000000e+00> : vector<8x128xf32>
    %8 = tpu.matmul %6, %7, %cst_12 {dimension_numbers = #tpu.dot_dimension_numbers<[1], [0], [0], [1], [0, 0, 1, 1], [], []>} : vector<8x256xf32>, vector<256x128xf32>, vector<8x128xf32> -> vector<8x128xf32>
    %c0_13 = arith.constant 0 : index
    %c0_14 = arith.constant 0 : index
    %9 = vector.load %arg4[%c0_13, %c0_14] : memref<1x128xf32, #tpu.memory_space<vmem>>, vector<1x128xf32>
    %10 = vector.broadcast %9 : vector<1x128xf32> to vector<8x128xf32>
    %11 = arith.addf %8, %10 : vector<8x128xf32>
    %cst_15 = arith.constant 0.000000e+00 : f32
    %12 = vector.broadcast %cst_15 : f32 to vector<8x128xf32>
    %13 = arith.maximumf %11, %12 : vector<8x128xf32>
    %c0_16 = arith.constant 0 : index
    %c0_17 = arith.constant 0 : index
    %14 = vector.load %arg5[%c0_16, %c0_17] : memref<128x128xf32, #tpu.memory_space<vmem>>, vector<128x128xf32>
    %cst_18 = arith.constant dense<0.000000e+00> : vector<8x128xf32>
    %15 = tpu.matmul %13, %14, %cst_18 {dimension_numbers = #tpu.dot_dimension_numbers<[1], [0], [0], [1], [0, 0, 1, 1], [], []>} : vector<8x128xf32>, vector<128x128xf32>, vector<8x128xf32> -> vector<8x128xf32>
    %c0_19 = arith.constant 0 : index
    %c0_20 = arith.constant 0 : index
    %16 = vector.load %arg6[%c0_19, %c0_20] : memref<1x128xf32, #tpu.memory_space<vmem>>, vector<1x128xf32>
    %17 = vector.broadcast %16 : vector<1x128xf32> to vector<8x128xf32>
    %18 = arith.addf %15, %17 : vector<8x128xf32>
    %cst_21 = arith.constant 0.000000e+00 : f32
    %19 = vector.broadcast %cst_21 : f32 to vector<8x128xf32>
    %20 = arith.maximumf %18, %19 : vector<8x128xf32>
    %c0_22 = arith.constant 0 : index
    %c0_23 = arith.constant 0 : index
    %21 = vector.load %arg7[%c0_22, %c0_23] : memref<128x128xf32, #tpu.memory_space<vmem>>, vector<128x128xf32>
    %cst_24 = arith.constant dense<0.000000e+00> : vector<8x128xf32>
    %22 = tpu.matmul %20, %21, %cst_24 {dimension_numbers = #tpu.dot_dimension_numbers<[1], [0], [0], [1], [0, 0, 1, 1], [], []>} : vector<8x128xf32>, vector<128x128xf32>, vector<8x128xf32> -> vector<8x128xf32>
    %c0_25 = arith.constant 0 : index
    %c0_26 = arith.constant 0 : index
    %23 = vector.load %arg8[%c0_25, %c0_26] : memref<1x128xf32, #tpu.memory_space<vmem>>, vector<1x128xf32>
    %24 = vector.broadcast %23 : vector<1x128xf32> to vector<8x128xf32>
    %25 = arith.addf %22, %24 : vector<8x128xf32>
    %c0_27 = arith.constant 0 : index
    %c0_28 = arith.constant 0 : index
    %26 = vector.load %arg9[%c0_27, %c0_28] : memref<8x128xf32, #tpu.memory_space<vmem>>, vector<8x128xf32>
    tpu.vector_store %arg9[%c0_27, %c0_28], %25 {strides = array<i32>} : memref<8x128xf32, #tpu.memory_space<vmem>>, vector<8x128xf32>,
    return
  }
  func.func @transform_0(%arg0: i32) -> (i32, i32) {
    %c0_i32 = arith.constant 0 : i32
    %c0_i32_0 = arith.constant 0 : i32
    return %arg0, %c0_i32 : i32, i32
  }
  func.func @transform_1(%arg0: i32) -> (i32, i32) {
    %c0_i32 = arith.constant 0 : i32
    %c0_i32_0 = arith.constant 0 : i32
    return %arg0, %c0_i32 : i32, i32
  }
  func.func @transform_2(%arg0: i32) -> (i32, i32) {
    %c0_i32 = arith.constant 0 : i32
    %c0_i32_0 = arith.constant 0 : i32
    %c0_i32_1 = arith.constant 0 : i32
    return %c0_i32, %c0_i32_0 : i32, i32
  }
  func.func @transform_3(%arg0: i32) -> (i32, i32) {
    %c0_i32 = arith.constant 0 : i32
    %c0_i32_0 = arith.constant 0 : i32
    %c0_i32_1 = arith.constant 0 : i32
    return %c0_i32, %c0_i32_0 : i32, i32
  }
  func.func @transform_4(%arg0: i32) -> (i32, i32) {
    %c0_i32 = arith.constant 0 : i32
    %c0_i32_0 = arith.constant 0 : i32
    %c0_i32_1 = arith.constant 0 : i32
    return %c0_i32, %c0_i32_0 : i32, i32
  }
  func.func @transform_5(%arg0: i32) -> (i32, i32) {
    %c0_i32 = arith.constant 0 : i32
    %c0_i32_0 = arith.constant 0 : i32
    %c0_i32_1 = arith.constant 0 : i32
    return %c0_i32, %c0_i32_0 : i32, i32
  }
  func.func @transform_6(%arg0: i32) -> (i32, i32) {
    %c0_i32 = arith.constant 0 : i32
    %c0_i32_0 = arith.constant 0 : i32
    %c0_i32_1 = arith.constant 0 : i32
    return %c0_i32, %c0_i32_0 : i32, i32
  }
  func.func @transform_7(%arg0: i32) -> (i32, i32) {
    %c0_i32 = arith.constant 0 : i32
    %c0_i32_0 = arith.constant 0 : i32
    %c0_i32_1 = arith.constant 0 : i32
    return %c0_i32, %c0_i32_0 : i32, i32
  }
  func.func @transform_8(%arg0: i32) -> (i32, i32) {
    %c0_i32 = arith.constant 0 : i32
    %c0_i32_0 = arith.constant 0 : i32
    return %arg0, %c0_i32 : i32, i32
  }
}

</mosaic_0001>

<llo_original>
// kernel: tpu_custom_call.1
$region0: #{tpu_custom_call.1}
  #allocation0 [shape = 'u32[]', space=smem, size = 0x4, offset = 0x4, fixed_abs, tag = 'smem constant byte address 0x4 - core index']
  #allocation1 [shape = 'u32[144,128]{1,0:T(1,128)}', space=vmem, size = 0x12000, scoped, tag = 'internal scratch']
  %s0 = inlined_call_operand.hbm [shape: f32[8,128], index: 0, kind: input, shape index: {}]
  %s1 = inlined_call_operand.hbm [shape: f32[16,128], index: 1, kind: output, shape index: {}]
  %s2 = sld [smem:[#allocation0]]
  $region41: #{tpu_custom_call.1} parent=0
    _
  %s4 = ssub.s32 1, %s2
  %s5 = scalar_select 0, %s4, %s2
  $region1: #{tpu_custom_call.1} parent=0
    #allocation2 [shape = 'u8[4096]{0}', space=vmem, size = 0x1000, scoped, tag = 'input window, operand 0, single buffered']
    #allocation3 [shape = 's32[2]{0}', space=sflag, size = 0x8, scoped, tag = 'scoped memory for tpu_custom_call.1']
    #allocation4 [shape = 's32[2]{0}', space=sflag, size = 0x8, scoped, tag = 'scoped memory for tpu_custom_call.1']
    #allocation5 [shape = 'u8[8192]{0}', space=vmem, size = 0x2000, scoped, tag = 'output window, operand 0']
    %6 = vsyncpa [#allocation3], 0
    %7 = vsyncpa [#allocation4], 0
    %s8 = scalar_lea.sflag [#allocation4], 1
    %9 = vsyncpa %s8, 0
    loop: start=0, step=1, limit=4
    $region2: #{tpu_custom_call.1} parent=1 // loop_pre_header
      _
    $region3: #{tpu_custom_call.1} parent=1 // loop_header
      %s11 = sphi 0, %s15
      %p12 = scmp.ge.s32.totalorder %s11, 4
      %s19 = sphi 0, %s19
      %s21 = sphi 0, %s19
      %s22 = sphi 0, %s21
      %s36 = sphi 0, %s22
      %s42 = sphi 0, %s44
      %s45 = sphi 0, %s42
      %s46 = sphi 0, %s45
      %s62 = sphi 0, %s46
    $region4: #{tpu_custom_call.1} parent=1 // loop_header_branch
      %14 = sbr.rel (%p12) target = $region8
    $region5: #{tpu_custom_call.1} parent=1 // loop_body
      %s16 = ssub.s32 %s11, 1
      %s17 = ssub.s32 %s11, 2
      %s18 = sadd.s32 %s11, 1
      %s20 = sadd.s32 %s19, 1
      %p23 = scmp.eq.s32.totalorder %s11, 1
      %p24 = scmp.ne.s32.totalorder %s19, %s21
      %p25 = scmp.eq.s32.totalorder %s11, 0
      %p26 = por %p24, %p25
      %p27 = scmp.ne.s32.totalorder %s19, %s21
      %p28 = scmp.eq.s32.totalorder %s16, 1
      %p29 = por %p27, %p28
      %p30 = scmp.ne.s32.totalorder %s21, %s22
      %p31 = scmp.eq.s32.totalorder %s16, 0
      %p32 = por %p30, %p31
      %p33 = scmp.ne.s32.totalorder %s21, %s22
      %p34 = scmp.eq.s32.totalorder %s17, 1
      %p35 = por %p33, %p34
      %p37 = scmp.ne.s32.totalorder %s22, %s36
      %p38 = scmp.eq.s32.totalorder %s17, 0
      %p39 = por %p37, %p38
      %s40 = ssub.s32 %s11, %s18
      %p41 = scmp.eq.s32.totalorder %s40, 0
      %s43 = sadd.s32 %s42, 1
      %s44 = scalar_select %p41, %s42, %s43
      %p47 = pneg %p41
      %p48 = scmp.eq.s32.totalorder %s11, 1
      %p49 = por %p47, %p48
      %p50 = scmp.ne.s32.totalorder %s42, %s45
      %p51 = scmp.eq.s32.totalorder %s11, 0
      %p52 = por %p50, %p51
      %p53 = scmp.ne.s32.totalorder %s42, %s45
      %p54 = scmp.eq.s32.totalorder %s16, 1
      %p55 = por %p53, %p54
      %p56 = scmp.ne.s32.totalorder %s45, %s46
      %p57 = scmp.eq.s32.totalorder %s16, 0
      %p58 = por %p56, %p57
      %p59 = scmp.ne.s32.totalorder %s45, %s46
      %p60 = scmp.eq.s32.totalorder %s17, 1
      %p61 = por %p59, %p60
      %p63 = scmp.ne.s32.totalorder %s46, %s62
      %p64 = scmp.eq.s32.totalorder %s17, 0
      %p65 = por %p63, %p64
      %p66 = scmp.le.s32.totalorder 1, %s11
      %p67 = scmp.lt.s32.totalorder %s11, 3
      %p68 = pnand %p66, %p67
      %p69 = pneg %p68
      // Predicated region
      $region9: #{tpu_custom_call.1} parent=5 // pred_check
        _
      $region10: #{tpu_custom_call.1} parent=5 // pred_check_branch
        %71 = sbr.rel (%p68) target = $region12
      $region11: #{tpu_custom_call.1} parent=5 // pred_region
        %s72 = ssub.s32 %s11, 1
        // Predicated region
        $region13: #{tpu_custom_call.1} parent=11 // pred_check
          %p73 = pneg %p32
        $region14: #{tpu_custom_call.1} parent=11 // pred_check_branch
          %75 = sbr.rel (%p73) target = $region16
        $region15: #{tpu_custom_call.1} parent=11 // pred_region
          %s77 = ssub.s32 128, 128
          %78 = vsyncadd [#allocation3], %s77
          %s80 = sshll.u32 [#allocation2], 4
          %s81 = int_to_ptr.vmem [resolvable:$true] %s80
          %83 = dma.hbm_to_vmem [thread:$0]  %s0, 128, %s81, [#allocation3]
        $region16: #{tpu_custom_call.1} parent=11 // pred_fallthru
          _
      $region12: #{tpu_custom_call.1} parent=5 // pred_fallthru
        _
      %p84 = scmp.lt.s32.totalorder %s11, 2
      // Predicated region
      $region17: #{tpu_custom_call.1} parent=5 // pred_check
        %p85 = pneg %p84
      $region18: #{tpu_custom_call.1} parent=5 // pred_check_branch
        %87 = sbr.rel (%p85) target = $region20
      $region19: #{tpu_custom_call.1} parent=5 // pred_region
        _
      $region20: #{tpu_custom_call.1} parent=5 // pred_fallthru
        _
      %p88 = scmp.le.s32.totalorder 1, %s11
      %p89 = scmp.lt.s32.totalorder %s11, 3
      %p90 = pnand %p88, %p89
      %p91 = pneg %p90
      // Predicated region
      $region21: #{tpu_custom_call.1} parent=5 // pred_check
        _
      $region22: #{tpu_custom_call.1} parent=5 // pred_check_branch
        %93 = sbr.rel (%p90) target = $region24
      $region23: #{tpu_custom_call.1} parent=5 // pred_region
        %s94 = ssub.s32 %s11, 1
        // Predicated region
        $region25: #{tpu_custom_call.1} parent=23 // pred_check
          %p95 = pneg %p32
        $region26: #{tpu_custom_call.1} parent=23 // pred_check_branch
          %97 = sbr.rel (%p95) target = $region28
        $region27: #{tpu_custom_call.1} parent=23 // pred_region
          %98 = dma.done [#allocation3], 128
        $region28: #{tpu_custom_call.1} parent=23 // pred_fallthru
          _
        %p99 = pneg %p32
        %p100 = pneg %p29
        %p101 = pneg %p58
        %p102 = pneg %p55
        %s103 = sand.u32 %s45, 1
        %s104 = scalar_lea.sflag [#allocation4], %s103
        %s105 = sand.u32 %s45, 1
        %s106 = smul.addr %s105, 8
        %s107 = scalar_lea.vmem [#allocation5], %s106
        %v108 = vld [vmem:[#allocation2] sm:$0xff]
        %109 = vst [vmem:[%s107] sm:$0xff] %v108
        %s110 = sand.u32 %s45, 1
        %s111 = scalar_lea.sflag [#allocation4], %s110
        %s112 = sand.u32 %s45, 1
        %s113 = smul.addr %s112, 8
        %s114 = scalar_lea.vmem [#allocation5], %s113
        // Predicated region
        $region29: #{tpu_custom_call.1} parent=23 // pred_check
          %p115 = pneg %p55
        $region30: #{tpu_custom_call.1} parent=23 // pred_check_branch
          %117 = sbr.rel (%p115) target = $region32
        $region31: #{tpu_custom_call.1} parent=23 // pred_region
          %s119 = ssub.s32 128, 128
          %120 = vsyncadd %s111, %s119
          %s121 = smul.addr %s16, 128
          %s122 = scalar_lea.hbm %s1, %s121
          %s124 = sshll.u32 %s114, 4
          %s125 = int_to_ptr.vmem [resolvable:$true] %s124
          %127 = dma.vmem_to_hbm [thread:$0]  %s125, 128, %s122, %s111
        $region32: #{tpu_custom_call.1} parent=23 // pred_fallthru
          _
      $region24: #{tpu_custom_call.1} parent=5 // pred_fallthru
        _
      %p128 = scmp.le.s32.totalorder 2, %s11
      // Predicated region
      $region33: #{tpu_custom_call.1} parent=5 // pred_check
        %p129 = pneg %p128
      $region34: #{tpu_custom_call.1} parent=5 // pred_check_branch
        %131 = sbr.rel (%p129) target = $region36
      $region35: #{tpu_custom_call.1} parent=5 // pred_region
        %s132 = ssub.s32 %s11, 2
        // Predicated region
        $region37: #{tpu_custom_call.1} parent=35 // pred_check
          %p133 = pneg %p61
        $region38: #{tpu_custom_call.1} parent=35 // pred_check_branch
          %135 = sbr.rel (%p133) target = $region40
        $region39: #{tpu_custom_call.1} parent=35 // pred_region
          %s136 = sand.u32 %s46, 1
          %s137 = scalar_lea.sflag [#allocation4], %s136
          %s138 = sand.u32 %s46, 1
          %s139 = smul.addr %s138, 8
          %s140 = scalar_lea.vmem [#allocation5], %s139
          %141 = dma.done %s137, 128
        $region40: #{tpu_custom_call.1} parent=35 // pred_fallthru
          _
      $region36: #{tpu_custom_call.1} parent=5 // pred_fallthru
        _
    $region6: #{tpu_custom_call.1} parent=1 // loop_footer
      %s15 = sadd.s32 1, %s11
    $region7: #{tpu_custom_call.1} parent=1 // loop_footer_branch
      %10 = sbr.rel target = $region3
    $region8: #{tpu_custom_call.1} parent=1 // loop_exit
      _
    %142 = vsyncpa [#allocation3], 1
    %s143 = scalar_lea.sflag [#allocation3], 1
    %144 = vsyncpa %s143, 1
    %145 = vsyncpa [#allocation4], 1
    %s146 = scalar_lea.sflag [#allocation4], 1
    %147 = vsyncpa %s146, 1

// kernel: tpu_custom_call.1
$region0: #{tpu_custom_call.1}
  #allocation0 [shape = 'u32[]', space=smem, size = 0x4, offset = 0x4, fixed_abs, tag = 'smem constant byte address 0x4 - core index']
  #allocation1 [shape = 'u32[144,128]{1,0:T(1,128)}', space=vmem, size = 0x12000, scoped, tag = 'internal scratch']
  #allocation2 [shape = 'f32[8,256]{1,0:T(8,128)}', space=vmem, size = 0x2000, scoped, tag = 'scratch operand']
  %s0 = inlined_call_operand.hbm [shape: f32[8,24], index: 0, kind: input, shape index: {}]
  %s1 = inlined_call_operand.hbm [shape: f32[8,8], index: 1, kind: input, shape index: {}]
  %s2 = inlined_call_operand.hbm [shape: f32[256,128], index: 2, kind: input, shape index: {}]
  %s3 = inlined_call_operand.vmem [shape: f32[1,128], index: 3, kind: input, shape index: {}]
  %s4 = inlined_call_operand.hbm [shape: f32[128,128], index: 4, kind: input, shape index: {}]
  %s5 = inlined_call_operand.vmem [shape: f32[1,128], index: 5, kind: input, shape index: {}]
  %s6 = inlined_call_operand.hbm [shape: f32[128,128], index: 6, kind: input, shape index: {}]
  %s7 = inlined_call_operand.vmem [shape: f32[1,128], index: 7, kind: input, shape index: {}]
  %s8 = inlined_call_operand.hbm [shape: f32[8,128], index: 8, kind: output, shape index: {}]
  %s9 = sld [smem:[#allocation0]]
  $region62: #{tpu_custom_call.1} parent=0
    _
  %s11 = ssub.s32 1, %s9
  %s12 = scalar_select 0, %s11, %s9
  $region1: #{tpu_custom_call.1} parent=0
    #allocation3 [shape = 'u8[4096]{0}', space=vmem, size = 0x1000, scoped, tag = 'input window, operand 0, single buffered']
    #allocation4 [shape = 's32[1]{0}', space=sflag, size = 0x4, scoped, tag = 'scoped memory for tpu_custom_call.1']
    #allocation5 [shape = 's32[1]{0}', space=sflag, size = 0x4, scoped, tag = 'scoped memory for tpu_custom_call.1']
    #allocation6 [shape = 'u8[4096]{0}', space=vmem, size = 0x1000, scoped, tag = 'input window, operand 1, single buffered']
    #allocation7 [shape = 's32[1]{0}', space=sflag, size = 0x4, scoped, tag = 'scoped memory for tpu_custom_call.1']
    #allocation8 [shape = 'u8[131072]{0}', space=vmem, size = 0x20000, scoped, tag = 'input window, operand 2, single buffered']
    #allocation9 [shape = 'u8[65536]{0}', space=vmem, size = 0x10000, scoped, tag = 'input window, operand 4, single buffered']
    #allocation10 [shape = 's32[1]{0}', space=sflag, size = 0x4, scoped, tag = 'scoped memory for tpu_custom_call.1']
    #allocation11 [shape = 'u8[65536]{0}', space=vmem, size = 0x10000, scoped, tag = 'input window, operand 6, single buffered']
    #allocation12 [shape = 'u8[4096]{0}', space=vmem, size = 0x1000, scoped, tag = 'output window, operand 0, single buffered']
    %13 = vsyncpa [#allocation4], 0
    %14 = vsyncpa [#allocation7], 0
    %15 = vsyncpa [#allocation10], 0
    %16 = vsyncpa [#allocation5], 0
    // Predicated region
    $region2: #{tpu_custom_call.1} parent=1 // pred_check
      _
    $region3: #{tpu_custom_call.1} parent=1 // pred_check_branch
      %18 = sbr.rel (0) target = $region5
    $region4: #{tpu_custom_call.1} parent=1 // pred_region
      %s20 = ssub.s32 128, 128
      %21 = vsyncadd [#allocation4], %s20
      %s23 = sshll.u32 [#allocation3], 4
      %s24 = int_to_ptr.vmem [resolvable:$true] %s23
      %26 = dma.hbm_to_vmem [thread:$0]  %s0, 128, %s24, [#allocation4]
    $region5: #{tpu_custom_call.1} parent=1 // pred_fallthru
      _
    // Predicated region
    $region6: #{tpu_custom_call.1} parent=1 // pred_check
      _
    $region7: #{tpu_custom_call.1} parent=1 // pred_check_branch
      %28 = sbr.rel (0) target = $region9
    $region8: #{tpu_custom_call.1} parent=1 // pred_region
      %s30 = ssub.s32 128, 128
      %31 = vsyncadd [#allocation7], %s30
      %s33 = sshll.u32 [#allocation6], 4
      %s34 = int_to_ptr.vmem [resolvable:$true] %s33
      %36 = dma.hbm_to_vmem [thread:$0]  %s1, 128, %s34, [#allocation7]
    $region9: #{tpu_custom_call.1} parent=1 // pred_fallthru
      _
    // Predicated region
    $region10: #{tpu_custom_call.1} parent=1 // pred_check
      _
    $region11: #{tpu_custom_call.1} parent=1 // pred_check_branch
      %38 = sbr.rel (0) target = $region13
    $region12: #{tpu_custom_call.1} parent=1 // pred_region
      %s40 = ssub.s32 4096, 4096
      %41 = vsyncadd [#allocation7], %s40
      %s42 = sshll.u32 [#allocation8], 4
      %s43 = int_to_ptr.vmem [resolvable:$true] %s42
      %48 = dma.hbm_to_vmem [thread:$0]  %s2, 4096, %s43, [#allocation7], 128, 128, 8
    $region13: #{tpu_custom_call.1} parent=1 // pred_fallthru
      _
    // Predicated region
    $region14: #{tpu_custom_call.1} parent=1 // pred_check
      _
    $region15: #{tpu_custom_call.1} parent=1 // pred_check_branch
      %50 = sbr.rel (0) target = $region17
    $region16: #{tpu_custom_call.1} parent=1 // pred_region
      _
    $region17: #{tpu_custom_call.1} parent=1 // pred_fallthru
      _
    // Predicated region
    $region18: #{tpu_custom_call.1} parent=1 // pred_check
      _
    $region19: #{tpu_custom_call.1} parent=1 // pred_check_branch
      %52 = sbr.rel (0) target = $region21
    $region20: #{tpu_custom_call.1} parent=1 // pred_region
      %s54 = ssub.s32 2048, 2048
      %55 = vsyncadd [#allocation10], %s54
      %s56 = sshll.u32 [#allocation9], 4
      %s57 = int_to_ptr.vmem [resolvable:$true] %s56
      %62 = dma.hbm_to_vmem [thread:$0]  %s4, 2048, %s57, [#allocation10], 128, 128, 8
    $region21: #{tpu_custom_call.1} parent=1 // pred_fallthru
      _
    // Predicated region
    $region22: #{tpu_custom_call.1} parent=1 // pred_check
      _
    $region23: #{tpu_custom_call.1} parent=1 // pred_check_branch
      %64 = sbr.rel (0) target = $region25
    $region24: #{tpu_custom_call.1} parent=1 // pred_region
      _
    $region25: #{tpu_custom_call.1} parent=1 // pred_fallthru
      _
    // Predicated region
    $region26: #{tpu_custom_call.1} parent=1 // pred_check
      _
    $region27: #{tpu_custom_call.1} parent=1 // pred_check_branch
      %66 = sbr.rel (0) target = $region29
    $region28: #{tpu_custom_call.1} parent=1 // pred_region
      %s68 = ssub.s32 2048, 2048
      %69 = vsyncadd [#allocation10], %s68
      %s70 = sshll.u32 [#allocation11], 4
      %s71 = int_to_ptr.vmem [resolvable:$true] %s70
      %76 = dma.hbm_to_vmem [thread:$0]  %s6, 2048, %s71, [#allocation10], 128, 128, 8
    $region29: #{tpu_custom_call.1} parent=1 // pred_fallthru
      _
    // Predicated region
    $region30: #{tpu_custom_call.1} parent=1 // pred_check
      _
    $region31: #{tpu_custom_call.1} parent=1 // pred_check_branch
      %78 = sbr.rel (0) target = $region33
    $region32: #{tpu_custom_call.1} parent=1 // pred_region
      _
    $region33: #{tpu_custom_call.1} parent=1 // pred_fallthru
      _
    // Predicated region
    $region34: #{tpu_custom_call.1} parent=1 // pred_check
      _
    $region35: #{tpu_custom_call.1} parent=1 // pred_check_branch
      %80 = sbr.rel (0) target = $region37
    $region36: #{tpu_custom_call.1} parent=1 // pred_region
      %81 = dma.done [#allocation4], 128
    $region37: #{tpu_custom_call.1} parent=1 // pred_fallthru
      _
    // Predicated region
    $region38: #{tpu_custom_call.1} parent=1 // pred_check
      _
    $region39: #{tpu_custom_call.1} parent=1 // pred_check_branch
      %83 = sbr.rel (0) target = $region41
    $region40: #{tpu_custom_call.1} parent=1 // pred_region
      %84 = dma.done [#allocation7], 128
    $region41: #{tpu_custom_call.1} parent=1 // pred_fallthru
      _
    // Predicated region
    $region42: #{tpu_custom_call.1} parent=1 // pred_check
      _
    $region43: #{tpu_custom_call.1} parent=1 // pred_check_branch
      %86 = sbr.rel (0) target = $region45
    $region44: #{tpu_custom_call.1} parent=1 // pred_region
      %87 = dma.done [#allocation7], 4096
    $region45: #{tpu_custom_call.1} parent=1 // pred_fallthru
      _
    // Predicated region
    $region46: #{tpu_custom_call.1} parent=1 // pred_check
      _
    $region47: #{tpu_custom_call.1} parent=1 // pred_check_branch
      %89 = sbr.rel (0) target = $region49
    $region48: #{tpu_custom_call.1} parent=1 // pred_region
      %90 = dma.done [#allocation10], 2048
    $region49: #{tpu_custom_call.1} parent=1 // pred_fallthru
      _
    // Predicated region
    $region50: #{tpu_custom_call.1} parent=1 // pred_check
      _
    $region51: #{tpu_custom_call.1} parent=1 // pred_check_branch
      %92 = sbr.rel (0) target = $region53
    $region52: #{tpu_custom_call.1} parent=1 // pred_region
      %93 = dma.done [#allocation10], 2048
    $region53: #{tpu_custom_call.1} parent=1 // pred_fallthru
      _
    %94 = vst [vmem:[#allocation2] sm:$0xff] 0.0
    %95 = vst [vmem:[#allocation2 + $0x8] sm:$0xff] 0.0
    %v96 = vld [vmem:[#allocation3] sm:$0xff]
    %vm97 = vcmask 195584
    %98 = vst.msk [vmem:[#allocation2] sm:$0xff] %vm97, %v96
    %v99 = vld [vmem:[#allocation6] sm:$0xff]
    %vm100 = vcmask 64512
    %101 = vst.msk [vmem:[#allocation2 + $0x8] sm:$0xff] %vm100, %v99
    %v102 = vld [vmem:[#allocation2] sm:$0xff]
    %v103 = vld [vmem:[#allocation2 + $0x8] sm:$0xff]
    %v104 = vld [vmem:[#allocation8] sm:$0xff]
    %v105 = vld [vmem:[#allocation8 + $0x8] sm:$0xff]
    %v106 = vld [vmem:[#allocation8 + $0x10] sm:$0xff]
    %v107 = vld [vmem:[#allocation8 + $0x18] sm:$0xff]
    %v108 = vld [vmem:[#allocation8 + $0x20] sm:$0xff]
    %v109 = vld [vmem:[#allocation8 + $0x28] sm:$0xff]
    %v110 = vld [vmem:[#allocation8 + $0x30] sm:$0xff]
    %v111 = vld [vmem:[#allocation8 + $0x38] sm:$0xff]
    %v112 = vld [vmem:[#allocation8 + $0x40] sm:$0xff]
    %v113 = vld [vmem:[#allocation8 + $0x48] sm:$0xff]
    %v114 = vld [vmem:[#allocation8 + $0x50] sm:$0xff]
    %v115 = vld [vmem:[#allocation8 + $0x58] sm:$0xff]
    %v116 = vld [vmem:[#allocation8 + $0x60] sm:$0xff]
    %v117 = vld [vmem:[#allocation8 + $0x68] sm:$0xff]
    %v118 = vld [vmem:[#allocation8 + $0x70] sm:$0xff]
    %v119 = vld [vmem:[#allocation8 + $0x78] sm:$0xff]
    %v120 = vld [vmem:[#allocation8 + $0x80] sm:$0xff]
    %v121 = vld [vmem:[#allocation8 + $0x88] sm:$0xff]
    %v122 = vld [vmem:[#allocation8 + $0x90] sm:$0xff]
    %v123 = vld [vmem:[#allocation8 + $0x98] sm:$0xff]
    %v124 = vld [vmem:[#allocation8 + $0xa0] sm:$0xff]
    %v125 = vld [vmem:[#allocation8 + $0xa8] sm:$0xff]
    %v126 = vld [vmem:[#allocation8 + $0xb0] sm:$0xff]
    %v127 = vld [vmem:[#allocation8 + $0xb8] sm:$0xff]
    %v128 = vld [vmem:[#allocation8 + $0xc0] sm:$0xff]
    %v129 = vld [vmem:[#allocation8 + $0xc8] sm:$0xff]
    %v130 = vld [vmem:[#allocation8 + $0xd0] sm:$0xff]
    %v131 = vld [vmem:[#allocation8 + $0xd8] sm:$0xff]
    %v132 = vld [vmem:[#allocation8 + $0xe0] sm:$0xff]
    %v133 = vld [vmem:[#allocation8 + $0xe8] sm:$0xff]
    %v134 = vld [vmem:[#allocation8 + $0xf0] sm:$0xff]
    %v135 = vld [vmem:[#allocation8 + $0xf8] sm:$0xff]
    %v136 = vld [vmem:[%s3] sm:$0x1]
    %v138 = vlaneseq
    %v139 = vshrl.u32 %v138, 7
    %v140 = vsub.s32 0, %v139
    %v141 = vrot.slane %v136, %v140
    %143 = vmatprep.subr.mxu0 0.0
    %144 = vmatpush1.msra.mxu0 %v104
    %145 = vmatprep.subr.mxu0 0.0
    %146 = vmatpush1.msra.mxu0 %v105
    %147 = vmatprep.subr.mxu0 0.0
    %148 = vmatpush1.msra.mxu0 %v106
    %149 = vmatprep.subr.mxu0 0.0
    %150 = vmatpush1.msra.mxu0 %v107
    %151 = vmatprep.subr.mxu0 0.0
    %152 = vmatpush1.msra.mxu0 %v108
    %153 = vmatprep.subr.mxu0 0.0
    %154 = vmatpush1.msra.mxu0 %v109
    %155 = vmatprep.subr.mxu0 0.0
    %156 = vmatpush1.msra.mxu0 %v110
    %157 = vmatprep.subr.mxu0 0.0
    %158 = vmatpush1.msra.mxu0 %v111
    %159 = vmatprep.subr.mxu0 0.0
    %160 = vmatpush1.msra.mxu0 %v112
    %161 = vmatprep.subr.mxu0 0.0
    %162 = vmatpush1.msra.mxu0 %v113
    %163 = vmatprep.subr.mxu0 0.0
    %164 = vmatpush1.msra.mxu0 %v114
    %165 = vmatprep.subr.mxu0 0.0
    %166 = vmatpush1.msra.mxu0 %v115
    %167 = vmatprep.subr.mxu0 0.0
    %168 = vmatpush1.msra.mxu0 %v116
    %169 = vmatprep.subr.mxu0 0.0
    %170 = vmatpush1.msra.mxu0 %v117
    %171 = vmatprep.subr.mxu0 0.0
    %172 = vmatpush1.msra.mxu0 %v118
    %173 = vmatprep.subr.mxu0 0.0
    %174 = vmatpush1.msra.mxu0 %v119
    %175 = vmatprep.subr.mxu0 0.0
    %176 = vmatpush1.msra.mxu0 %v120
    %177 = vmatprep.subr.mxu0 0.0
    %178 = vmatpush1.msra.mxu0 %v121
    %179 = vmatprep.subr.mxu0 0.0
    %180 = vmatpush1.msra.mxu0 %v122
    %181 = vmatprep.subr.mxu0 0.0
    %182 = vmatpush1.msra.mxu0 %v123
    %183 = vmatprep.subr.mxu0 0.0
    %184 = vmatpush1.msra.mxu0 %v124
    %185 = vmatprep.subr.mxu0 0.0
    %186 = vmatpush1.msra.mxu0 %v125
    %187 = vmatprep.subr.mxu0 0.0
    %188 = vmatpush1.msra.mxu0 %v126
    %189 = vmatprep.subr.mxu0 0.0
    %190 = vmatpush1.msra.mxu0 %v127
    %191 = vmatprep.subr.mxu0 0.0
    %192 = vmatpush1.msra.mxu0 %v128
    %193 = vmatprep.subr.mxu0 0.0
    %194 = vmatpush1.msra.mxu0 %v129
    %195 = vmatprep.subr.mxu0 0.0
    %196 = vmatpush1.msra.mxu0 %v130
    %197 = vmatprep.subr.mxu0 0.0
    %198 = vmatpush1.msra.mxu0 %v131
    %199 = vmatprep.subr.mxu0 0.0
    %200 = vmatpush1.msra.mxu0 %v132
    %201 = vmatprep.subr.mxu0 0.0
    %202 = vmatpush1.msra.mxu0 %v133
    %203 = vmatprep.subr.mxu0 0.0
    %204 = vmatpush1.msra.mxu0 %v134
    %205 = vmatprep.subr.mxu0 0.0
    %206 = vmatpush1.msra.mxu0 %v135
    %207 = vmatprep.mubr.f32.mxu0 %v103
    %208 = vmatmul.mubr.f32.gmra.mrb[0].mxu0 %v102
    %v209 = vpop.f32.mrb[0].mxu0
    %v210 = vadd.f32 %v141, %v209
    %v211 = vpop.f32.mrb[0].mxu0
    %212 = vdwg.mxu0
    %v213 = vmax.f32 %v210, 0.0
    %v214 = vld [vmem:[#allocation9] sm:$0xff]
    %v215 = vld [vmem:[#allocation9 + $0x8] sm:$0xff]
    %v216 = vld [vmem:[#allocation9 + $0x10] sm:$0xff]
    %v217 = vld [vmem:[#allocation9 + $0x18] sm:$0xff]
    %v218 = vld [vmem:[#allocation9 + $0x20] sm:$0xff]
    %v219 = vld [vmem:[#allocation9 + $0x28] sm:$0xff]
    %v220 = vld [vmem:[#allocation9 + $0x30] sm:$0xff]
    %v221 = vld [vmem:[#allocation9 + $0x38] sm:$0xff]
    %v222 = vld [vmem:[#allocation9 + $0x40] sm:$0xff]
    %v223 = vld [vmem:[#allocation9 + $0x48] sm:$0xff]
    %v224 = vld [vmem:[#allocation9 + $0x50] sm:$0xff]
    %v225 = vld [vmem:[#allocation9 + $0x58] sm:$0xff]
    %v226 = vld [vmem:[#allocation9 + $0x60] sm:$0xff]
    %v227 = vld [vmem:[#allocation9 + $0x68] sm:$0xff]
    %v228 = vld [vmem:[#allocation9 + $0x70] sm:$0xff]
    %v229 = vld [vmem:[#allocation9 + $0x78] sm:$0xff]
    %v230 = vld [vmem:[%s5] sm:$0x1]
    %v232 = vlaneseq
    %v233 = vshrl.u32 %v232, 7
    %v234 = vsub.s32 0, %v233
    %v235 = vrot.slane %v230, %v234
    %237 = vmatprep.subr.mxu0 0.0
    %238 = vmatpush1.msra.mxu0 %v214
    %239 = vmatprep.subr.mxu0 0.0
    %240 = vmatpush1.msra.mxu0 %v215
    %241 = vmatprep.subr.mxu0 0.0
    %242 = vmatpush1.msra.mxu0 %v216
    %243 = vmatprep.subr.mxu0 0.0
    %244 = vmatpush1.msra.mxu0 %v217
    %245 = vmatprep.subr.mxu0 0.0
    %246 = vmatpush1.msra.mxu0 %v218
    %247 = vmatprep.subr.mxu0 0.0
    %248 = vmatpush1.msra.mxu0 %v219
    %249 = vmatprep.subr.mxu0 0.0
    %250 = vmatpush1.msra.mxu0 %v220
    %251 = vmatprep.subr.mxu0 0.0
    %252 = vmatpush1.msra.mxu0 %v221
    %253 = vmatprep.subr.mxu0 0.0
    %254 = vmatpush1.msra.mxu0 %v222
    %255 = vmatprep.subr.mxu0 0.0
    %256 = vmatpush1.msra.mxu0 %v223
    %257 = vmatprep.subr.mxu0 0.0
    %258 = vmatpush1.msra.mxu0 %v224
    %259 = vmatprep.subr.mxu0 0.0
    %260 = vmatpush1.msra.mxu0 %v225
    %261 = vmatprep.subr.mxu0 0.0
    %262 = vmatpush1.msra.mxu0 %v226
    %263 = vmatprep.subr.mxu0 0.0
    %264 = vmatpush1.msra.mxu0 %v227
    %265 = vmatprep.subr.mxu0 0.0
    %266 = vmatpush1.msra.mxu0 %v228
    %267 = vmatprep.subr.mxu0 0.0
    %268 = vmatpush1.msra.mxu0 %v229
    %269 = vmatprep.subr.mxu0 0.0
    %270 = vmatpush1.msra.mxu0 0.0
    %271 = vmatprep.subr.mxu0 0.0
    %272 = vmatpush1.msra.mxu0 0.0
    %273 = vmatprep.subr.mxu0 0.0
    %274 = vmatpush1.msra.mxu0 0.0
    %275 = vmatprep.subr.mxu0 0.0
    %276 = vmatpush1.msra.mxu0 0.0
    %277 = vmatprep.subr.mxu0 0.0
    %278 = vmatpush1.msra.mxu0 0.0
    %279 = vmatprep.subr.mxu0 0.0
    %280 = vmatpush1.msra.mxu0 0.0
    %281 = vmatprep.subr.mxu0 0.0
    %282 = vmatpush1.msra.mxu0 0.0
    %283 = vmatprep.subr.mxu0 0.0
    %284 = vmatpush1.msra.mxu0 0.0
    %285 = vmatprep.subr.mxu0 0.0
    %286 = vmatpush1.msra.mxu0 0.0
    %287 = vmatprep.subr.mxu0 0.0
    %288 = vmatpush1.msra.mxu0 0.0
    %289 = vmatprep.subr.mxu0 0.0
    %290 = vmatpush1.msra.mxu0 0.0
    %291 = vmatprep.subr.mxu0 0.0
    %292 = vmatpush1.msra.mxu0 0.0
    %293 = vmatprep.subr.mxu0 0.0
    %294 = vmatpush1.msra.mxu0 0.0
    %295 = vmatprep.subr.mxu0 0.0
    %296 = vmatpush1.msra.mxu0 0.0
    %297 = vmatprep.subr.mxu0 0.0
    %298 = vmatpush1.msra.mxu0 0.0
    %299 = vmatprep.subr.mxu0 0.0
    %300 = vmatpush1.msra.mxu0 0.0
    %301 = vmatprep.mubr.f32.mxu0 0.0
    %302 = vmatmul.mubr.f32.gmra.mrb[0].mxu0 %v213
    %v303 = vpop.f32.mrb[0].mxu0
    %v304 = vadd.f32 %v235, %v303
    %v305 = vpop.f32.mrb[0].mxu0
    %306 = vdwg.mxu0
    %v307 = vmax.f32 %v304, 0.0
    %v308 = vld [vmem:[#allocation11] sm:$0xff]
    %v309 = vld [vmem:[#allocation11 + $0x8] sm:$0xff]
    %v310 = vld [vmem:[#allocation11 + $0x10] sm:$0xff]
    %v311 = vld [vmem:[#allocation11 + $0x18] sm:$0xff]
    %v312 = vld [vmem:[#allocation11 + $0x20] sm:$0xff]
    %v313 = vld [vmem:[#allocation11 + $0x28] sm:$0xff]
    %v314 = vld [vmem:[#allocation11 + $0x30] sm:$0xff]
    %v315 = vld [vmem:[#allocation11 + $0x38] sm:$0xff]
    %v316 = vld [vmem:[#allocation11 + $0x40] sm:$0xff]
    %v317 = vld [vmem:[#allocation11 + $0x48] sm:$0xff]
    %v318 = vld [vmem:[#allocation11 + $0x50] sm:$0xff]
    %v319 = vld [vmem:[#allocation11 + $0x58] sm:$0xff]
    %v320 = vld [vmem:[#allocation11 + $0x60] sm:$0xff]
    %v321 = vld [vmem:[#allocation11 + $0x68] sm:$0xff]
    %v322 = vld [vmem:[#allocation11 + $0x70] sm:$0xff]
    %v323 = vld [vmem:[#allocation11 + $0x78] sm:$0xff]
    %v324 = vld [vmem:[%s7] sm:$0x1]
    %v326 = vlaneseq
    %v327 = vshrl.u32 %v326, 7
    %v328 = vsub.s32 0, %v327
    %v329 = vrot.slane %v324, %v328
    %331 = vmatprep.subr.mxu0 0.0
    %332 = vmatpush1.msra.mxu0 %v308
    %333 = vmatprep.subr.mxu0 0.0
    %334 = vmatpush1.msra.mxu0 %v309
    %335 = vmatprep.subr.mxu0 0.0
    %336 = vmatpush1.msra.mxu0 %v310
    %337 = vmatprep.subr.mxu0 0.0
    %338 = vmatpush1.msra.mxu0 %v311
    %339 = vmatprep.subr.mxu0 0.0
    %340 = vmatpush1.msra.mxu0 %v312
    %341 = vmatprep.subr.mxu0 0.0
    %342 = vmatpush1.msra.mxu0 %v313
    %343 = vmatprep.subr.mxu0 0.0
    %344 = vmatpush1.msra.mxu0 %v314
    %345 = vmatprep.subr.mxu0 0.0
    %346 = vmatpush1.msra.mxu0 %v315
    %347 = vmatprep.subr.mxu0 0.0
    %348 = vmatpush1.msra.mxu0 %v316
    %349 = vmatprep.subr.mxu0 0.0
    %350 = vmatpush1.msra.mxu0 %v317
    %351 = vmatprep.subr.mxu0 0.0
    %352 = vmatpush1.msra.mxu0 %v318
    %353 = vmatprep.subr.mxu0 0.0
    %354 = vmatpush1.msra.mxu0 %v319
    %355 = vmatprep.subr.mxu0 0.0
    %356 = vmatpush1.msra.mxu0 %v320
    %357 = vmatprep.subr.mxu0 0.0
    %358 = vmatpush1.msra.mxu0 %v321
    %359 = vmatprep.subr.mxu0 0.0
    %360 = vmatpush1.msra.mxu0 %v322
    %361 = vmatprep.subr.mxu0 0.0
    %362 = vmatpush1.msra.mxu0 %v323
    %363 = vmatprep.subr.mxu0 0.0
    %364 = vmatpush1.msra.mxu0 0.0
    %365 = vmatprep.subr.mxu0 0.0
    %366 = vmatpush1.msra.mxu0 0.0
    %367 = vmatprep.subr.mxu0 0.0
    %368 = vmatpush1.msra.mxu0 0.0
    %369 = vmatprep.subr.mxu0 0.0
    %370 = vmatpush1.msra.mxu0 0.0
    %371 = vmatprep.subr.mxu0 0.0
    %372 = vmatpush1.msra.mxu0 0.0
    %373 = vmatprep.subr.mxu0 0.0
    %374 = vmatpush1.msra.mxu0 0.0
    %375 = vmatprep.subr.mxu0 0.0
    %376 = vmatpush1.msra.mxu0 0.0
    %377 = vmatprep.subr.mxu0 0.0
    %378 = vmatpush1.msra.mxu0 0.0
    %379 = vmatprep.subr.mxu0 0.0
    %380 = vmatpush1.msra.mxu0 0.0
    %381 = vmatprep.subr.mxu0 0.0
    %382 = vmatpush1.msra.mxu0 0.0
    %383 = vmatprep.subr.mxu0 0.0
    %384 = vmatpush1.msra.mxu0 0.0
    %385 = vmatprep.subr.mxu0 0.0
    %386 = vmatpush1.msra.mxu0 0.0
    %387 = vmatprep.subr.mxu0 0.0
    %388 = vmatpush1.msra.mxu0 0.0
    %389 = vmatprep.subr.mxu0 0.0
    %390 = vmatpush1.msra.mxu0 0.0
    %391 = vmatprep.subr.mxu0 0.0
    %392 = vmatpush1.msra.mxu0 0.0
    %393 = vmatprep.subr.mxu0 0.0
    %394 = vmatpush1.msra.mxu0 0.0
    %395 = vmatprep.mubr.f32.mxu0 0.0
    %396 = vmatmul.mubr.f32.gmra.mrb[0].mxu0 %v307
    %v397 = vpop.f32.mrb[0].mxu0
    %v398 = vadd.f32 %v329, %v397
    %v399 = vpop.f32.mrb[0].mxu0
    %400 = vdwg.mxu0
    %401 = vst [vmem:[#allocation12] sm:$0xff] %v398
    // Predicated region
    $region54: #{tpu_custom_call.1} parent=1 // pred_check
      _
    $region55: #{tpu_custom_call.1} parent=1 // pred_check_branch
      %403 = sbr.rel (0) target = $region57
    $region56: #{tpu_custom_call.1} parent=1 // pred_region
      %s405 = ssub.s32 128, 128
      %406 = vsyncadd [#allocation5], %s405
      %s408 = sshll.u32 [#allocation12], 4
      %s409 = int_to_ptr.vmem [resolvable:$true] %s408
      %411 = dma.vmem_to_hbm [thread:$0]  %s409, 128, %s8, [#allocation5]
    $region57: #{tpu_custom_call.1} parent=1 // pred_fallthru
      _
    // Predicated region
    $region58: #{tpu_custom_call.1} parent=1 // pred_check
      _
    $region59: #{tpu_custom_call.1} parent=1 // pred_check_branch
      %413 = sbr.rel (0) target = $region61
    $region60: #{tpu_custom_call.1} parent=1 // pred_region
      %414 = dma.done [#allocation5], 128
    $region61: #{tpu_custom_call.1} parent=1 // pred_fallthru
      _
    %415 = vsyncpa [#allocation4], 1
    %416 = vsyncpa [#allocation7], 1
    %417 = vsyncpa [#allocation10], 1
    %418 = vsyncpa [#allocation5], 1

</llo_original>
